<compile_context>
chip_gen: v6e
topology: v6e:2x2x1
jax: 0.10.0
libtpu: 0.0.40
codegen_flags: <defaults>
</compile_context>

<pallas_src>
import jax
import jax.numpy as jnp
from jax.experimental import pallas as pl
from jax.experimental.pallas import tpu as pltpu


def _linear_sum_kernel(x_ref, w_ref, b_ref, sum_ref):
    # x_ref:   (B, 10)  VMEM f32   input activations
    # w_ref:   (10, 10) VMEM f32   PyTorch Linear layout: [out_features, in_features]
    # b_ref:   (1, 10)  VMEM f32   bias row
    # sum_ref: (1,)     SMEM f32   scalar output
    x = x_ref[...]
    w = w_ref[...]
    b = b_ref[...]

    # sum_{b,o} (x @ W.T)[b,o] = sum_k (sum_b x[b,k]) * (sum_o W[o,k])
    col_x = jnp.sum(x, axis=0)                  # (10,)  sum over batch rows   (XLU)
    col_w = jnp.sum(w, axis=0)                  # (10,)  sum over out-feature rows (XLU)
    batch = jnp.float32(x_ref.shape[0])         # static Python int -> f32 constant

    # bias contributes sum(b) once per output row (B rows total)
    s = jnp.sum(col_x * col_w) + batch * jnp.sum(b)
    sum_ref[0] = s


def module_b_forward(x, weight, bias):
    """Returns (s, s_detached) matching ModuleB.forward: (fc(x).sum(), fc(x).sum().data)."""
    bias2d = bias.reshape(1, -1)
    out = pl.pallas_call(
        _linear_sum_kernel,
        out_shape=jax.ShapeDtypeStruct((1,), jnp.float32),
        in_specs=[
            pl.BlockSpec(memory_space=pltpu.MemorySpace.VMEM),
            pl.BlockSpec(memory_space=pltpu.MemorySpace.VMEM),
            pl.BlockSpec(memory_space=pltpu.MemorySpace.VMEM),
        ],
        out_specs=pl.BlockSpec(memory_space=pltpu.MemorySpace.SMEM),
    )(x, weight, bias2d)
    s = out[0]
    # y = x.data in PyTorch == same value, detached from autograd
    return s, jax.lax.stop_gradient(s)


if __name__ == "__main__":
    key = jax.random.PRNGKey(0)
    k_x, k_w, k_b = jax.random.split(key, 3)

    B, IN, OUT = 8, 10, 10
    x = jax.random.normal(k_x, (B, IN), dtype=jnp.float32)
    # Deterministic init mimicking torch.nn.Linear default (uniform +/- 1/sqrt(in_features))
    bound = 1.0 / (IN ** 0.5)
    weight = jax.random.uniform(k_w, (OUT, IN), jnp.float32, -bound, bound)
    bias = jax.random.uniform(k_b, (OUT,), jnp.float32, -bound, bound)

    s, s_det = module_b_forward(x, weight, bias)
    jax.block_until_ready((s, s_det))

    # sanity check vs plain-JAX reference of the original module semantics
    ref = jnp.sum(x @ weight.T + bias)
    assert jnp.allclose(s, ref, rtol=1e-5, atol=1e-5), (s, ref)
    assert jnp.allclose(s_det, ref, rtol=1e-5, atol=1e-5)

    print("KERNEL_OK")
</pallas_src>

<mosaic_0001>
module attributes {stable_mosaic.version = 11 : i64} {
  func.func @_linear_sum_kernel(%arg0: memref<8x10xf32, #tpu.memory_space<vmem>>, %arg1: memref<10x10xf32, #tpu.memory_space<vmem>>, %arg2: memref<1x10xf32, #tpu.memory_space<vmem>>, %arg3: memref<1xf32, #tpu.memory_space<smem>>) attributes {dimension_semantics = [], scalar_prefetch = 0 : i64, scratch_operands = 0 : i64, tpu.core_type = #tpu.core_type<tc>} {
    %c0 = arith.constant 0 : index
    %c0_0 = arith.constant 0 : index
    %0 = vector.load %arg0[%c0, %c0_0] : memref<8x10xf32, #tpu.memory_space<vmem>>, vector<8x10xf32>
    %c0_1 = arith.constant 0 : index
    %c0_2 = arith.constant 0 : index
    %1 = vector.load %arg1[%c0_1, %c0_2] : memref<10x10xf32, #tpu.memory_space<vmem>>, vector<10x10xf32>
    %c0_3 = arith.constant 0 : index
    %c0_4 = arith.constant 0 : index
    %2 = vector.load %arg2[%c0_3, %c0_4] : memref<1x10xf32, #tpu.memory_space<vmem>>, vector<1x10xf32>
    %cst = arith.constant dense<0.000000e+00> : vector<10xf32>
    %3 = vector.multi_reduction <add>, %0, %cst [0] : vector<8x10xf32> to vector<10xf32>
    %cst_5 = arith.constant dense<0.000000e+00> : vector<10xf32>
    %4 = vector.multi_reduction <add>, %1, %cst_5 [0] : vector<10x10xf32> to vector<10xf32>
    %5 = arith.mulf %3, %4 : vector<10xf32>
    %6 = vector.shape_cast %5 : vector<10xf32> to vector<1x10xf32>
    %cst_6 = arith.constant dense<0.000000e+00> : vector<1xf32>
    %7 = vector.multi_reduction <add>, %6, %cst_6 [1] : vector<1x10xf32> to vector<1xf32>
    %8 = vector.shape_cast %7 : vector<1xf32> to vector<1x1xf32>
    %9 = vector.extract %8[0, 0] : f32 from vector<1x1xf32>
    %10 = vector.shape_cast %2 : vector<1x10xf32> to vector<1x1x10xf32>
    %cst_7 = arith.constant dense<0.000000e+00> : vector<1xf32>
    %11 = vector.multi_reduction <add>, %10, %cst_7 [1, 2] : vector<1x1x10xf32> to vector<1xf32>
    %12 = vector.shape_cast %11 : vector<1xf32> to vector<1x1x1xf32>
    %13 = vector.extract %12[0, 0, 0] : f32 from vector<1x1x1xf32>
    %cst_8 = arith.constant 8.000000e+00 : f32
    %14 = arith.mulf %cst_8, %13 : f32
    %15 = arith.addf %9, %14 : f32
    %c0_9 = arith.constant 0 : index
    %16 = memref.load %arg3[%c0_9] : memref<1xf32, #tpu.memory_space<smem>>
    memref.store %15, %arg3[%c0_9] : memref<1xf32, #tpu.memory_space<smem>>
    return
  }
}

</mosaic_0001>

<llo_original>
// kernel: tpu_custom_call.1
$region0: #{tpu_custom_call.1}
  #allocation0 [shape = 'u32[]', space=smem, size = 0x4, offset = 0x4, fixed_abs, tag = 'smem constant byte address 0x4 - core index']
  #allocation1 [shape = 'u32[144,128]{1,0:T(1,128)}', space=vmem, size = 0x12000, scoped, tag = 'internal scratch']
  %s0 = inlined_call_operand.hbm [shape: f32[8,10], index: 0, kind: input, shape index: {}]
  %s1 = inlined_call_operand.hbm [shape: f32[10,10], index: 1, kind: input, shape index: {}]
  %s2 = inlined_call_operand.vmem [shape: f32[1,10], index: 2, kind: input, shape index: {}]
  %s3 = inlined_call_operand.hbm [shape: f32[1], index: 3, kind: output, shape index: {}]
  %s4 = sld [smem:[#allocation0]]
  $region30: #{tpu_custom_call.1} parent=0
    _
  %s6 = ssub.s32 1, %s4
  %s7 = scalar_select 0, %s6, %s4
  $region1: #{tpu_custom_call.1} parent=0
    #allocation2 [shape = 'u8[4096]{0}', space=vmem, size = 0x1000, scoped, tag = 'input window, operand 0, single buffered']
    #allocation3 [shape = 's32[1]{0}', space=sflag, size = 0x4, scoped, tag = 'scoped memory for tpu_custom_call.1']
    #allocation4 [shape = 's32[1]{0}', space=sflag, size = 0x4, scoped, tag = 'scoped memory for tpu_custom_call.1']
    #allocation5 [shape = 'u8[8192]{0}', space=vmem, size = 0x2000, scoped, tag = 'input window, operand 1, single buffered']
    #allocation6 [shape = 's32[1]{0}', space=sflag, size = 0x4, scoped, tag = 'scoped memory for tpu_custom_call.1']
    #allocation7 [shape = 'u8[512]{0}', space=smem, size = 0x200, scoped, tag = 'output window, operand 0, single buffered']
    %8 = vsyncpa [#allocation3], 0
    %9 = vsyncpa [#allocation6], 0
    %10 = vsyncpa [#allocation4], 0
    // Predicated region
    $region2: #{tpu_custom_call.1} parent=1 // pred_check
      _
    $region3: #{tpu_custom_call.1} parent=1 // pred_check_branch
      %12 = sbr.rel (0) target = $region5
    $region4: #{tpu_custom_call.1} parent=1 // pred_region
      %s14 = ssub.s32 128, 128
      %15 = vsyncadd [#allocation3], %s14
      %s17 = sshll.u32 [#allocation2], 4
      %s18 = int_to_ptr.vmem [resolvable:$true] %s17
      %20 = dma.hbm_to_vmem [thread:$0]  %s0, 128, %s18, [#allocation3]
    $region5: #{tpu_custom_call.1} parent=1 // pred_fallthru
      _
    // Predicated region
    $region6: #{tpu_custom_call.1} parent=1 // pred_check
      _
    $region7: #{tpu_custom_call.1} parent=1 // pred_check_branch
      %22 = sbr.rel (0) target = $region9
    $region8: #{tpu_custom_call.1} parent=1 // pred_region
      %s24 = ssub.s32 256, 256
      %25 = vsyncadd [#allocation6], %s24
      %s26 = sshll.u32 [#allocation5], 4
      %s27 = int_to_ptr.vmem [resolvable:$true] %s26
      %32 = dma.hbm_to_vmem [thread:$0]  %s1, 256, %s27, [#allocation6], 128, 128, 8
    $region9: #{tpu_custom_call.1} parent=1 // pred_fallthru
      _
    // Predicated region
    $region10: #{tpu_custom_call.1} parent=1 // pred_check
      _
    $region11: #{tpu_custom_call.1} parent=1 // pred_check_branch
      %34 = sbr.rel (0) target = $region13
    $region12: #{tpu_custom_call.1} parent=1 // pred_region
      _
    $region13: #{tpu_custom_call.1} parent=1 // pred_fallthru
      _
    // Predicated region
    $region14: #{tpu_custom_call.1} parent=1 // pred_check
      _
    $region15: #{tpu_custom_call.1} parent=1 // pred_check_branch
      %36 = sbr.rel (0) target = $region17
    $region16: #{tpu_custom_call.1} parent=1 // pred_region
      %37 = dma.done [#allocation3], 128
    $region17: #{tpu_custom_call.1} parent=1 // pred_fallthru
      _
    // Predicated region
    $region18: #{tpu_custom_call.1} parent=1 // pred_check
      _
    $region19: #{tpu_custom_call.1} parent=1 // pred_check_branch
      %39 = sbr.rel (0) target = $region21
    $region20: #{tpu_custom_call.1} parent=1 // pred_region
      %40 = dma.done [#allocation6], 256
    $region21: #{tpu_custom_call.1} parent=1 // pred_fallthru
      _
    %v41 = vld [vmem:[#allocation2] sm:$0xff]
    %v42 = vld [vmem:[#allocation5] sm:$0xff]
    %v43 = vld [vmem:[#allocation5 + $0x8] sm:$0x3]
    %v44 = vld [vmem:[%s2] sm:$0x1]
    %vm45 = vcmask 80896
    %v46 = vsel %vm45, %v41, 0.0
    %v47 = vrot.slane %v46, 4
    %v48 = vadd.f32 %v46, %v47
    %v49 = vrot.slane %v48, 2
    %v50 = vadd.f32 %v48, %v49
    %v51 = vrot.slane %v50, 1
    %v52 = vadd.f32 %v50, %v51
    %v53 = vsel %vm45, %v42, 0.0
    %vm54 = vcmask 74752
    %v55 = vsel %vm54, %v43, 0.0
    %v56 = vadd.f32 %v53, %v55
    %v57 = vrot.slane %v56, 4
    %v58 = vadd.f32 %v56, %v57
    %v59 = vrot.slane %v58, 2
    %v60 = vadd.f32 %v58, %v59
    %v61 = vrot.slane %v60, 1
    %v62 = vadd.f32 %v60, %v61
    %v63 = vmul.f32 %v52, %v62
    %v64 = vsel %vm45, %v63, 0.0
    %65 = vadd.xlane.f32.xlu0 %v64
    %v66 = vpop.xlane.xlu0 %65
    %s67 = vtos %v66
    %vm68 = vcmask 73728
    %v69 = vsel %vm68, %v44, 0.0
    %70 = vadd.xlane.f32.xlu0 %v69
    %v71 = vpop.xlane.xlu0 %70
    %v72 = vrot.slane %v71, 4
    %v73 = vadd.f32 %v71, %v72
    %v74 = vrot.slane %v73, 2
    %v75 = vadd.f32 %v73, %v74
    %v76 = vrot.slane %v75, 1
    %v77 = vadd.f32 %v75, %v76
    %s78 = vtos %v77
    %s79 = smul.f32 %s78, 8.0
    %s80 = sadd.f32 %s67, %s79
    %s81 = scalar_lea.smem [#allocation7], 0
    %82 = sst [smem:[%s81]] %s80
    // Predicated region
    $region22: #{tpu_custom_call.1} parent=1 // pred_check
      _
    $region23: #{tpu_custom_call.1} parent=1 // pred_check_branch
      %84 = sbr.rel (0) target = $region25
    $region24: #{tpu_custom_call.1} parent=1 // pred_region
      %s86 = ssub.s32 16, 16
      %87 = vsyncadd [#allocation4], %s86
      %90 = dma.smem_to_hbm [#allocation7], 16, %s3, [#allocation4]
    $region25: #{tpu_custom_call.1} parent=1 // pred_fallthru
      _
    // Predicated region
    $region26: #{tpu_custom_call.1} parent=1 // pred_check
      _
    $region27: #{tpu_custom_call.1} parent=1 // pred_check_branch
      %92 = sbr.rel (0) target = $region29
    $region28: #{tpu_custom_call.1} parent=1 // pred_region
      %93 = dma.done [#allocation4], 16
    $region29: #{tpu_custom_call.1} parent=1 // pred_fallthru
      _
    %94 = sfence
    %95 = vsyncpa [#allocation3], 1
    %96 = vsyncpa [#allocation6], 1
    %97 = vsyncpa [#allocation4], 1

</llo_original>
